<compile_context>
chip_gen: v7x
topology: tpu7x:2x2x1
jax: 0.10.0
libtpu: 0.0.40
codegen_flags: <defaults>
</compile_context>

<pallas_src>
import jax
import jax.numpy as jnp
from jax.experimental import pallas as pl
from jax.experimental.pallas import tpu as pltpu


def stgc_fused_kernel(x_ref, w_ref, a_ref, o_ref):
    """Single-invocation fused kernel.

    x_ref: (N, T*F)   input, node-major / lane-dense (free view of native (N, T, F))
    w_ref: (F, F)     weight
    a_ref: (N, N)     raw (un-normalized) adjacency
    o_ref: (T, N, F)  output, already in the PyTorch return layout
    """
    n = a_ref.shape[0]
    t_steps, _, f = o_ref.shape

    # --- adjacency normalization: A_norm @ X == d * (A_hat @ (d * X)) -------------
    rows = jax.lax.broadcasted_iota(jnp.int32, (n, n), 0)
    cols = jax.lax.broadcasted_iota(jnp.int32, (n, n), 1)
    eye = (rows == cols).astype(jnp.float32)
    a_hat = a_ref[...] + eye                                           # (N, N)
    d = jax.lax.rsqrt(jnp.sum(a_hat, axis=1, keepdims=True))          # (N, 1), EUP

    # --- node-axis mix on the whole lane-dense slab: one (N,N)@(N,T*F) MXU op -----
    mixed = d * jnp.dot(a_hat, d * x_ref[...],
                        preferred_element_type=jnp.float32)            # (N, T*F)

    # --- per-time-step feature transform + ReLU + direct (T, N, F) slab store -----
    w = w_ref[...]                                                      # (F, F)
    for t in range(t_steps):                                            # static unroll (T=8)
        sl = mixed[:, t * f:(t + 1) * f]                                # (N, F) static lane slice
        out_t = jnp.dot(sl, w, preferred_element_type=jnp.float32)      # (N, F), MXU
        o_ref[t] = jnp.maximum(out_t, 0.0).astype(o_ref.dtype)          # VPU + store


def norm_spatiotemporal_graph_deconv(x, adjacency, weight):
    """x: (N, T, F) f32, adjacency: (N, N) f32, weight: (F, F) f32 -> (T, N, F) f32."""
    N, T, F = x.shape
    assert adjacency.shape == (N, N)
    assert weight.shape == (F, F)

    # Free contiguous view of x (no transpose, no extra XLA op).
    x_wide = x.reshape(N, T * F)

    flops = 2 * N * N * (T * F) + 2 * (N * T) * F * F
    bytes_accessed = 4 * (N * T * F + F * F + N * N + T * N * F)

    # Single un-gridded invocation; whole arrays live in VMEM (no double buffering,
    # no pipeline prologue).  Output comes back in the final (T, N, F) layout.
    return pl.pallas_call(
        stgc_fused_kernel,
        out_shape=jax.ShapeDtypeStruct((T, N, F), jnp.float32),
        in_specs=[
            pl.BlockSpec(memory_space=pltpu.MemorySpace.VMEM),   # x_wide (N, T*F)
            pl.BlockSpec(memory_space=pltpu.MemorySpace.VMEM),   # weight (F, F)
            pl.BlockSpec(memory_space=pltpu.MemorySpace.VMEM),   # adjacency (N, N)
        ],
        out_specs=pl.BlockSpec(memory_space=pltpu.MemorySpace.VMEM),
        cost_estimate=pl.CostEstimate(
            flops=flops, transcendentals=N, bytes_accessed=bytes_accessed),
    )(x_wide, weight, adjacency)


def reference(x, adjacency, weight):
    """Pure-JAX reference mirroring the PyTorch forward exactly."""
    n = adjacency.shape[0]
    a_hat = adjacency + jnp.eye(n, dtype=adjacency.dtype)
    d_hat = jnp.diag(jnp.power(a_hat.sum(1), -0.5))
    a_norm = d_hat @ a_hat @ d_hat
    support = jnp.matmul(x, weight)                  # (N, T, F)
    support = jnp.transpose(support, (1, 0, 2))      # (T, N, F)
    output = jnp.matmul(a_norm, support)             # (N,N) @ (T,N,F) -> (T,N,F)
    return jax.nn.relu(output)


if __name__ == "__main__":
    # Small shapes: N nodes, T time steps, F features (in_features == out_features == F
    # as implied by the (out_features, out_features) weight shape).
    N, T, F = 16, 8, 32

    key = jax.random.PRNGKey(0)
    kx, ka, kw = jax.random.split(key, 3)

    x = jax.random.normal(kx, (N, T, F), dtype=jnp.float32)
    adjacency = jax.random.uniform(ka, (N, N), dtype=jnp.float32)

    # Deterministic xavier-uniform init for weight (fan_in = fan_out = F); zeros bias.
    bound = (6.0 / (F + F)) ** 0.5
    weight = jax.random.uniform(kw, (F, F), minval=-bound, maxval=bound,
                                dtype=jnp.float32)
    bias = jnp.zeros((F, F), dtype=jnp.float32)  # created by the module, unused in forward()

    out = norm_spatiotemporal_graph_deconv(x, adjacency, weight)
    out = jax.block_until_ready(out)

    ref = reference(x, adjacency, weight)
    assert out.shape == (T, N, F)
    assert jnp.allclose(out, ref, atol=1e-3, rtol=1e-3), "mismatch vs reference"

    print("KERNEL_OK")
</pallas_src>

<mosaic_0001>
module attributes {stable_mosaic.version = 11 : i64} {
  func.func @stgc_fused_kernel(%arg0: memref<16x256xf32, #tpu.memory_space<vmem>>, %arg1: memref<32x32xf32, #tpu.memory_space<vmem>>, %arg2: memref<16x16xf32, #tpu.memory_space<vmem>>, %arg3: memref<8x16x32xf32, #tpu.memory_space<vmem>>) attributes {dimension_semantics = [], scalar_prefetch = 0 : i64, scratch_operands = 0 : i64, tpu.core_type = #tpu.core_type<tc>} {
    %0 = tpu.iota {dimensions = array<i32: 0>} : vector<16x16xi32>
    %1 = tpu.iota {dimensions = array<i32: 1>} : vector<16x16xi32>
    %2 = arith.cmpi eq, %0, %1 : vector<16x16xi32>
    %3 = arith.extui %2 : vector<16x16xi1> to vector<16x16xi32>
    %4 = arith.sitofp %3 : vector<16x16xi32> to vector<16x16xf32>
    %c0 = arith.constant 0 : index
    %c0_0 = arith.constant 0 : index
    %5 = vector.load %arg2[%c0, %c0_0] : memref<16x16xf32, #tpu.memory_space<vmem>>, vector<16x16xf32>
    %6 = arith.addf %5, %4 : vector<16x16xf32>
    %cst = arith.constant dense<0.000000e+00> : vector<16xf32>
    %7 = vector.multi_reduction <add>, %6, %cst [1] : vector<16x16xf32> to vector<16xf32>
    %8 = vector.shape_cast %7 : vector<16xf32> to vector<16x1xf32>
    %9 = math.rsqrt %8 : vector<16x1xf32>
    %c0_1 = arith.constant 0 : index
    %c0_2 = arith.constant 0 : index
    %10 = vector.load %arg0[%c0_1, %c0_2] : memref<16x256xf32, #tpu.memory_space<vmem>>, vector<16x256xf32>
    %11 = vector.broadcast %9 : vector<16x1xf32> to vector<16x256xf32>
    %12 = arith.mulf %11, %10 : vector<16x256xf32>
    %cst_3 = arith.constant dense<0.000000e+00> : vector<16x256xf32>
    %13 = tpu.matmul %6, %12, %cst_3 {dimension_numbers = #tpu.dot_dimension_numbers<[1], [0], [0], [1], [0, 0, 1, 1], [], []>} : vector<16x16xf32>, vector<16x256xf32>, vector<16x256xf32> -> vector<16x256xf32>
    %14 = vector.broadcast %9 : vector<16x1xf32> to vector<16x256xf32>
    %15 = arith.mulf %14, %13 : vector<16x256xf32>
    %c0_4 = arith.constant 0 : index
    %c0_5 = arith.constant 0 : index
    %16 = vector.load %arg1[%c0_4, %c0_5] : memref<32x32xf32, #tpu.memory_space<vmem>>, vector<32x32xf32>
    %17 = vector.extract_strided_slice %15 {offsets = [0, 0], sizes = [16, 32], strides = [1, 1]} : vector<16x256xf32> to vector<16x32xf32>
    %cst_6 = arith.constant dense<0.000000e+00> : vector<16x32xf32>
    %18 = tpu.matmul %17, %16, %cst_6 {dimension_numbers = #tpu.dot_dimension_numbers<[1], [0], [0], [1], [0, 0, 1, 1], [], []>} : vector<16x32xf32>, vector<32x32xf32>, vector<16x32xf32> -> vector<16x32xf32>
    %cst_7 = arith.constant 0.000000e+00 : f32
    %19 = vector.broadcast %cst_7 : f32 to vector<16x32xf32>
    %20 = arith.maximumf %18, %19 : vector<16x32xf32>
    %c0_8 = arith.constant 0 : index
    %c0_9 = arith.constant 0 : index
    %c0_10 = arith.constant 0 : index
    %21 = vector.load %arg3[%c0_8, %c0_9, %c0_10] : memref<8x16x32xf32, #tpu.memory_space<vmem>>, vector<1x16x32xf32>
    %22 = vector.shape_cast %21 : vector<1x16x32xf32> to vector<16x32xf32>
    %23 = vector.shape_cast %20 : vector<16x32xf32> to vector<1x16x32xf32>
    tpu.vector_store %arg3[%c0_8, %c0_9, %c0_10], %23 {strides = array<i32>} : memref<8x16x32xf32, #tpu.memory_space<vmem>>, vector<1x16x32xf32>,
    %24 = vector.extract_strided_slice %15 {offsets = [0, 32], sizes = [16, 32], strides = [1, 1]} : vector<16x256xf32> to vector<16x32xf32>
    %cst_11 = arith.constant dense<0.000000e+00> : vector<16x32xf32>
    %25 = tpu.matmul %24, %16, %cst_11 {dimension_numbers = #tpu.dot_dimension_numbers<[1], [0], [0], [1], [0, 0, 1, 1], [], []>} : vector<16x32xf32>, vector<32x32xf32>, vector<16x32xf32> -> vector<16x32xf32>
    %cst_12 = arith.constant 0.000000e+00 : f32
    %26 = vector.broadcast %cst_12 : f32 to vector<16x32xf32>
    %27 = arith.maximumf %25, %26 : vector<16x32xf32>
    %c1 = arith.constant 1 : index
    %c0_13 = arith.constant 0 : index
    %c0_14 = arith.constant 0 : index
    %28 = vector.load %arg3[%c1, %c0_13, %c0_14] : memref<8x16x32xf32, #tpu.memory_space<vmem>>, vector<1x16x32xf32>
    %29 = vector.shape_cast %28 : vector<1x16x32xf32> to vector<16x32xf32>
    %30 = vector.shape_cast %27 : vector<16x32xf32> to vector<1x16x32xf32>
    tpu.vector_store %arg3[%c1, %c0_13, %c0_14], %30 {strides = array<i32>} : memref<8x16x32xf32, #tpu.memory_space<vmem>>, vector<1x16x32xf32>,
    %31 = vector.extract_strided_slice %15 {offsets = [0, 64], sizes = [16, 32], strides = [1, 1]} : vector<16x256xf32> to vector<16x32xf32>
    %cst_15 = arith.constant dense<0.000000e+00> : vector<16x32xf32>
    %32 = tpu.matmul %31, %16, %cst_15 {dimension_numbers = #tpu.dot_dimension_numbers<[1], [0], [0], [1], [0, 0, 1, 1], [], []>} : vector<16x32xf32>, vector<32x32xf32>, vector<16x32xf32> -> vector<16x32xf32>
    %cst_16 = arith.constant 0.000000e+00 : f32
    %33 = vector.broadcast %cst_16 : f32 to vector<16x32xf32>
    %34 = arith.maximumf %32, %33 : vector<16x32xf32>
    %c2 = arith.constant 2 : index
    %c0_17 = arith.constant 0 : index
    %c0_18 = arith.constant 0 : index
    %35 = vector.load %arg3[%c2, %c0_17, %c0_18] : memref<8x16x32xf32, #tpu.memory_space<vmem>>, vector<1x16x32xf32>
    %36 = vector.shape_cast %35 : vector<1x16x32xf32> to vector<16x32xf32>
    %37 = vector.shape_cast %34 : vector<16x32xf32> to vector<1x16x32xf32>
    tpu.vector_store %arg3[%c2, %c0_17, %c0_18], %37 {strides = array<i32>} : memref<8x16x32xf32, #tpu.memory_space<vmem>>, vector<1x16x32xf32>,
    %38 = vector.extract_strided_slice %15 {offsets = [0, 96], sizes = [16, 32], strides = [1, 1]} : vector<16x256xf32> to vector<16x32xf32>
    %cst_19 = arith.constant dense<0.000000e+00> : vector<16x32xf32>
    %39 = tpu.matmul %38, %16, %cst_19 {dimension_numbers = #tpu.dot_dimension_numbers<[1], [0], [0], [1], [0, 0, 1, 1], [], []>} : vector<16x32xf32>, vector<32x32xf32>, vector<16x32xf32> -> vector<16x32xf32>
    %cst_20 = arith.constant 0.000000e+00 : f32
    %40 = vector.broadcast %cst_20 : f32 to vector<16x32xf32>
    %41 = arith.maximumf %39, %40 : vector<16x32xf32>
    %c3 = arith.constant 3 : index
    %c0_21 = arith.constant 0 : index
    %c0_22 = arith.constant 0 : index
    %42 = vector.load %arg3[%c3, %c0_21, %c0_22] : memref<8x16x32xf32, #tpu.memory_space<vmem>>, vector<1x16x32xf32>
    %43 = vector.shape_cast %42 : vector<1x16x32xf32> to vector<16x32xf32>
    %44 = vector.shape_cast %41 : vector<16x32xf32> to vector<1x16x32xf32>
    tpu.vector_store %arg3[%c3, %c0_21, %c0_22], %44 {strides = array<i32>} : memref<8x16x32xf32, #tpu.memory_space<vmem>>, vector<1x16x32xf32>,
    %45 = vector.extract_strided_slice %15 {offsets = [0, 128], sizes = [16, 32], strides = [1, 1]} : vector<16x256xf32> to vector<16x32xf32>
    %cst_23 = arith.constant dense<0.000000e+00> : vector<16x32xf32>
    %46 = tpu.matmul %45, %16, %cst_23 {dimension_numbers = #tpu.dot_dimension_numbers<[1], [0], [0], [1], [0, 0, 1, 1], [], []>} : vector<16x32xf32>, vector<32x32xf32>, vector<16x32xf32> -> vector<16x32xf32>
    %cst_24 = arith.constant 0.000000e+00 : f32
    %47 = vector.broadcast %cst_24 : f32 to vector<16x32xf32>
    %48 = arith.maximumf %46, %47 : vector<16x32xf32>
    %c4 = arith.constant 4 : index
    %c0_25 = arith.constant 0 : index
    %c0_26 = arith.constant 0 : index
    %49 = vector.load %arg3[%c4, %c0_25, %c0_26] : memref<8x16x32xf32, #tpu.memory_space<vmem>>, vector<1x16x32xf32>
    %50 = vector.shape_cast %49 : vector<1x16x32xf32> to vector<16x32xf32>
    %51 = vector.shape_cast %48 : vector<16x32xf32> to vector<1x16x32xf32>
    tpu.vector_store %arg3[%c4, %c0_25, %c0_26], %51 {strides = array<i32>} : memref<8x16x32xf32, #tpu.memory_space<vmem>>, vector<1x16x32xf32>,
    %52 = vector.extract_strided_slice %15 {offsets = [0, 160], sizes = [16, 32], strides = [1, 1]} : vector<16x256xf32> to vector<16x32xf32>
    %cst_27 = arith.constant dense<0.000000e+00> : vector<16x32xf32>
    %53 = tpu.matmul %52, %16, %cst_27 {dimension_numbers = #tpu.dot_dimension_numbers<[1], [0], [0], [1], [0, 0, 1, 1], [], []>} : vector<16x32xf32>, vector<32x32xf32>, vector<16x32xf32> -> vector<16x32xf32>
    %cst_28 = arith.constant 0.000000e+00 : f32
    %54 = vector.broadcast %cst_28 : f32 to vector<16x32xf32>
    %55 = arith.maximumf %53, %54 : vector<16x32xf32>
    %c5 = arith.constant 5 : index
    %c0_29 = arith.constant 0 : index
    %c0_30 = arith.constant 0 : index
    %56 = vector.load %arg3[%c5, %c0_29, %c0_30] : memref<8x16x32xf32, #tpu.memory_space<vmem>>, vector<1x16x32xf32>
    %57 = vector.shape_cast %56 : vector<1x16x32xf32> to vector<16x32xf32>
    %58 = vector.shape_cast %55 : vector<16x32xf32> to vector<1x16x32xf32>
    tpu.vector_store %arg3[%c5, %c0_29, %c0_30], %58 {strides = array<i32>} : memref<8x16x32xf32, #tpu.memory_space<vmem>>, vector<1x16x32xf32>,
    %59 = vector.extract_strided_slice %15 {offsets = [0, 192], sizes = [16, 32], strides = [1, 1]} : vector<16x256xf32> to vector<16x32xf32>
    %cst_31 = arith.constant dense<0.000000e+00> : vector<16x32xf32>
    %60 = tpu.matmul %59, %16, %cst_31 {dimension_numbers = #tpu.dot_dimension_numbers<[1], [0], [0], [1], [0, 0, 1, 1], [], []>} : vector<16x32xf32>, vector<32x32xf32>, vector<16x32xf32> -> vector<16x32xf32>
    %cst_32 = arith.constant 0.000000e+00 : f32
    %61 = vector.broadcast %cst_32 : f32 to vector<16x32xf32>
    %62 = arith.maximumf %60, %61 : vector<16x32xf32>
    %c6 = arith.constant 6 : index
    %c0_33 = arith.constant 0 : index
    %c0_34 = arith.constant 0 : index
    %63 = vector.load %arg3[%c6, %c0_33, %c0_34] : memref<8x16x32xf32, #tpu.memory_space<vmem>>, vector<1x16x32xf32>
    %64 = vector.shape_cast %63 : vector<1x16x32xf32> to vector<16x32xf32>
    %65 = vector.shape_cast %62 : vector<16x32xf32> to vector<1x16x32xf32>
    tpu.vector_store %arg3[%c6, %c0_33, %c0_34], %65 {strides = array<i32>} : memref<8x16x32xf32, #tpu.memory_space<vmem>>, vector<1x16x32xf32>,
    %66 = vector.extract_strided_slice %15 {offsets = [0, 224], sizes = [16, 32], strides = [1, 1]} : vector<16x256xf32> to vector<16x32xf32>
    %cst_35 = arith.constant dense<0.000000e+00> : vector<16x32xf32>
    %67 = tpu.matmul %66, %16, %cst_35 {dimension_numbers = #tpu.dot_dimension_numbers<[1], [0], [0], [1], [0, 0, 1, 1], [], []>} : vector<16x32xf32>, vector<32x32xf32>, vector<16x32xf32> -> vector<16x32xf32>
    %cst_36 = arith.constant 0.000000e+00 : f32
    %68 = vector.broadcast %cst_36 : f32 to vector<16x32xf32>
    %69 = arith.maximumf %67, %68 : vector<16x32xf32>
    %c7 = arith.constant 7 : index
    %c0_37 = arith.constant 0 : index
    %c0_38 = arith.constant 0 : index
    %70 = vector.load %arg3[%c7, %c0_37, %c0_38] : memref<8x16x32xf32, #tpu.memory_space<vmem>>, vector<1x16x32xf32>
    %71 = vector.shape_cast %70 : vector<1x16x32xf32> to vector<16x32xf32>
    %72 = vector.shape_cast %69 : vector<16x32xf32> to vector<1x16x32xf32>
    tpu.vector_store %arg3[%c7, %c0_37, %c0_38], %72 {strides = array<i32>} : memref<8x16x32xf32, #tpu.memory_space<vmem>>, vector<1x16x32xf32>,
    return
  }
}

</mosaic_0001>

<llo_original>
// kernel: tpu_custom_call.1
$region0: #{tpu_custom_call.1}
  #allocation0 [shape = 'u32[]', space=smem, size = 0x4, offset = 0x4, fixed_abs, tag = 'smem constant byte address 0x4 - core index']
  #allocation1 [shape = 'u32[144,128]{1,0:T(1,128)}', space=vmem, size = 0x12000, scoped, tag = 'internal scratch']
  %s0 = inlined_call_operand.hbm [shape: f32[16,256], index: 0, kind: input, shape index: {}]
  %s1 = inlined_call_operand.hbm [shape: f32[32,32], index: 1, kind: input, shape index: {}]
  %s2 = inlined_call_operand.hbm [shape: f32[16,16], index: 2, kind: input, shape index: {}]
  %s3 = inlined_call_operand.hbm [shape: f32[8,16,32], index: 3, kind: output, shape index: {}]
  %s4 = sld [smem:[#allocation0]]
  $region34: #{tpu_custom_call.1} parent=0
    _
  %s6 = ssub.s32 1, %s4
  %s7 = scalar_select 0, %s6, %s4
  $region1: #{tpu_custom_call.1} parent=0
    #allocation2 [shape = 'u8[16384]{0}', space=vmem, size = 0x4000, scoped, tag = 'input window, operand 0, single buffered']
    #allocation3 [shape = 's32[1]{0}', space=sflag, size = 0x4, scoped, tag = 'scoped memory for tpu_custom_call.1']
    #allocation4 [shape = 's32[1]{0}', space=sflag, size = 0x4, scoped, tag = 'scoped memory for tpu_custom_call.1']
    #allocation5 [shape = 'u8[16384]{0}', space=vmem, size = 0x4000, scoped, tag = 'input window, operand 1, single buffered']
    #allocation6 [shape = 's32[1]{0}', space=sflag, size = 0x4, scoped, tag = 'scoped memory for tpu_custom_call.1']
    #allocation7 [shape = 'u8[8192]{0}', space=vmem, size = 0x2000, scoped, tag = 'input window, operand 2, single buffered']
    #allocation8 [shape = 'u8[65536]{0}', space=vmem, size = 0x10000, scoped, tag = 'output window, operand 0, single buffered']
    %8 = vsyncpa [#allocation3], 0
    %9 = vsyncpa [#allocation6], 0
    %10 = vsyncpa [#allocation4], 0
    // Predicated region
    $region2: #{tpu_custom_call.1} parent=1 // pred_check
      _
    $region3: #{tpu_custom_call.1} parent=1 // pred_check_branch
      %12 = sbr.rel (0) target = $region5
    $region4: #{tpu_custom_call.1} parent=1 // pred_region
      %s14 = ssub.s32 512, 512
      %15 = vsyncadd [#allocation3], %s14
      %s16 = sshll.u32 [#allocation2], 4
      %s17 = int_to_ptr.vmem [resolvable:$true] %s16
      %22 = dma.hbm_to_vmem [thread:$0]  %s0, 512, %s17, [#allocation3], 256, 256, 16
    $region5: #{tpu_custom_call.1} parent=1 // pred_fallthru
      _
    // Predicated region
    $region6: #{tpu_custom_call.1} parent=1 // pred_check
      _
    $region7: #{tpu_custom_call.1} parent=1 // pred_check_branch
      %24 = sbr.rel (0) target = $region9
    $region8: #{tpu_custom_call.1} parent=1 // pred_region
      %s26 = ssub.s32 512, 512
      %27 = vsyncadd [#allocation6], %s26
      %s28 = sshll.u32 [#allocation5], 4
      %s29 = int_to_ptr.vmem [resolvable:$true] %s28
      %34 = dma.hbm_to_vmem [thread:$0]  %s1, 512, %s29, [#allocation6], 128, 128, 8
    $region9: #{tpu_custom_call.1} parent=1 // pred_fallthru
      _
    // Predicated region
    $region10: #{tpu_custom_call.1} parent=1 // pred_check
      _
    $region11: #{tpu_custom_call.1} parent=1 // pred_check_branch
      %36 = sbr.rel (0) target = $region13
    $region12: #{tpu_custom_call.1} parent=1 // pred_region
      %s38 = ssub.s32 256, 256
      %39 = vsyncadd [#allocation6], %s38
      %s40 = sshll.u32 [#allocation7], 4
      %s41 = int_to_ptr.vmem [resolvable:$true] %s40
      %46 = dma.hbm_to_vmem [thread:$0]  %s2, 256, %s41, [#allocation6], 128, 128, 8
    $region13: #{tpu_custom_call.1} parent=1 // pred_fallthru
      _
    // Predicated region
    $region14: #{tpu_custom_call.1} parent=1 // pred_check
      _
    $region15: #{tpu_custom_call.1} parent=1 // pred_check_branch
      %48 = sbr.rel (0) target = $region17
    $region16: #{tpu_custom_call.1} parent=1 // pred_region
      %49 = dma.done [#allocation3], 512
    $region17: #{tpu_custom_call.1} parent=1 // pred_fallthru
      _
    // Predicated region
    $region18: #{tpu_custom_call.1} parent=1 // pred_check
      _
    $region19: #{tpu_custom_call.1} parent=1 // pred_check_branch
      %51 = sbr.rel (0) target = $region21
    $region20: #{tpu_custom_call.1} parent=1 // pred_region
      %52 = dma.done [#allocation6], 512
    $region21: #{tpu_custom_call.1} parent=1 // pred_fallthru
      _
    // Predicated region
    $region22: #{tpu_custom_call.1} parent=1 // pred_check
      _
    $region23: #{tpu_custom_call.1} parent=1 // pred_check_branch
      %54 = sbr.rel (0) target = $region25
    $region24: #{tpu_custom_call.1} parent=1 // pred_region
      %55 = dma.done [#allocation6], 256
    $region25: #{tpu_custom_call.1} parent=1 // pred_fallthru
      _
    %v56 = vlaneseq
    %v57 = vshrl.u32 %v56, 7
    %v58 = vadd.s32 %v57, 8
    %v59 = vlaneseq
    %v60 = vand.u32 %v59, 127
    %vm61 = vcmp.eq.s32.totalorder %v57, %v60
    %vm62 = vcmp.eq.s32.totalorder %v58, %v60
    %v63 = vsel %vm61, 1, 0
    %v64 = vsel %vm62, 1, 0
    %v65 = vcvt.s32.f32 %v63
    %v66 = vcvt.s32.f32 %v64
    %v67 = vld [vmem:[#allocation7] sm:$0xff]
    %v68 = vld [vmem:[#allocation7 + $0x8] sm:$0xff]
    %v69 = vadd.f32 %v67, %v65
    %v70 = vadd.f32 %v68, %v66
    %vm71 = vcmask 130048
    %v72 = vsel %vm71, %v69, 0.0
    %73 = vadd.xlane.f32.xlu0 %v72
    %v74 = vpop.xlane.xlu0 %73
    %v75 = vsel %vm71, %v70, 0.0
    %76 = vadd.xlane.f32.xlu0 %v75
    %v77 = vpop.xlane.xlu0 %76
    %v78 = vrsqrt.pop %v74
    %v79 = vrsqrt.pop %v77
    %v80 = vld [vmem:[#allocation2] sm:$0xff]
    %v81 = vld [vmem:[#allocation2 + $0x8] sm:$0xff]
    %v82 = vld [vmem:[#allocation2 + $0x10] sm:$0xff]
    %v83 = vld [vmem:[#allocation2 + $0x18] sm:$0xff]
    %v84 = vmul.f32 %v78, %v80
    %v85 = vmul.f32 %v78, %v81
    %v86 = vmul.f32 %v79, %v82
    %v87 = vmul.f32 %v79, %v83
    %v89 = vsel %vm71, %v69, 0
    %v92 = vsel %vm71, %v70, 0
    %94 = vmatprep.subr.mxu0 %v85
    %95 = vmatpush1.msra.mxu0 %v84
    %96 = vmatprep.subr.mxu0 %v87
    %97 = vmatpush1.msra.mxu0 %v86
    %98 = vmatprep.subr.mxu0 0.0
    %99 = vmatpush1.msra.mxu0 0.0
    %100 = vmatprep.subr.mxu0 0.0
    %101 = vmatpush1.msra.mxu0 0.0
    %102 = vmatprep.subr.mxu0 0.0
    %103 = vmatpush1.msra.mxu0 0.0
    %104 = vmatprep.subr.mxu0 0.0
    %105 = vmatpush1.msra.mxu0 0.0
    %106 = vmatprep.subr.mxu0 0.0
    %107 = vmatpush1.msra.mxu0 0.0
    %108 = vmatprep.subr.mxu0 0.0
    %109 = vmatpush1.msra.mxu0 0.0
    %110 = vmatprep.subr.mxu0 0.0
    %111 = vmatpush1.msra.mxu0 0.0
    %112 = vmatprep.subr.mxu0 0.0
    %113 = vmatpush1.msra.mxu0 0.0
    %114 = vmatprep.subr.mxu0 0.0
    %115 = vmatpush1.msra.mxu0 0.0
    %116 = vmatprep.subr.mxu0 0.0
    %117 = vmatpush1.msra.mxu0 0.0
    %118 = vmatprep.subr.mxu0 0.0
    %119 = vmatpush1.msra.mxu0 0.0
    %120 = vmatprep.subr.mxu0 0.0
    %121 = vmatpush1.msra.mxu0 0.0
    %122 = vmatprep.subr.mxu0 0.0
    %123 = vmatpush1.msra.mxu0 0.0
    %124 = vmatprep.subr.mxu0 0.0
    %125 = vmatpush1.msra.mxu0 0.0
    %126 = vmatprep.subr.mxu0 0.0
    %127 = vmatpush1.msra.mxu0 0.0
    %128 = vmatprep.subr.mxu0 0.0
    %129 = vmatpush1.msra.mxu0 0.0
    %130 = vmatprep.subr.mxu0 0.0
    %131 = vmatpush1.msra.mxu0 0.0
    %132 = vmatprep.subr.mxu0 0.0
    %133 = vmatpush1.msra.mxu0 0.0
    %134 = vmatprep.subr.mxu0 0.0
    %135 = vmatpush1.msra.mxu0 0.0
    %136 = vmatprep.subr.mxu0 0.0
    %137 = vmatpush1.msra.mxu0 0.0
    %138 = vmatprep.subr.mxu0 0.0
    %139 = vmatpush1.msra.mxu0 0.0
    %140 = vmatprep.subr.mxu0 0.0
    %141 = vmatpush1.msra.mxu0 0.0
    %142 = vmatprep.subr.mxu0 0.0
    %143 = vmatpush1.msra.mxu0 0.0
    %144 = vmatprep.subr.mxu0 0.0
    %145 = vmatpush1.msra.mxu0 0.0
    %146 = vmatprep.subr.mxu0 0.0
    %147 = vmatpush1.msra.mxu0 0.0
    %148 = vmatprep.subr.mxu0 0.0
    %149 = vmatpush1.msra.mxu0 0.0
    %150 = vmatprep.subr.mxu0 0.0
    %151 = vmatpush1.msra.mxu0 0.0
    %152 = vmatprep.subr.mxu0 0.0
    %153 = vmatpush1.msra.mxu0 0.0
    %154 = vmatprep.subr.mxu0 0.0
    %155 = vmatpush1.msra.mxu0 0.0
    %156 = vmatprep.subr.mxu0 0.0
    %157 = vmatpush1.msra.mxu0 0.0
    %158 = vmatprep.mubr.f32.mxu0 0.0
    %159 = vmatmul.mubr.f32.gmra.mrb[0].mxu0 %v89
    %v160 = vpop.f32.mrb[0].mxu0
    %v161 = vadd.f32 0.0, %v160
    %v162 = vpop.f32.mrb[0].mxu0
    %v163 = vadd.f32 0.0, %v162
    %164 = vmatprep.mubr.f32.mxu0 0.0
    %165 = vmatmul.mubr.f32.gmra.mrb[0].mxu0 %v92
    %v166 = vpop.f32.mrb[0].mxu0
    %v167 = vadd.f32 0.0, %v166
    %v168 = vpop.f32.mrb[0].mxu0
    %v169 = vadd.f32 0.0, %v168
    %170 = vdwg.mxu0
    %v171 = vmul.f32 %v78, %v161
    %v172 = vmul.f32 %v78, %v163
    %v173 = vmul.f32 %v79, %v167
    %v174 = vmul.f32 %v79, %v169
    %v175 = vld [vmem:[#allocation5] sm:$0xff]
    %v176 = vld [vmem:[#allocation5 + $0x8] sm:$0xff]
    %v177 = vld [vmem:[#allocation5 + $0x10] sm:$0xff]
    %v178 = vld [vmem:[#allocation5 + $0x18] sm:$0xff]
    %vm179 = vcmask 261120
    %v181 = vsel %vm179, %v171, 0
    %v184 = vsel %vm179, %v173, 0
    %186 = vmatprep.subr.mxu0 0.0
    %187 = vmatpush1.msra.mxu0 %v175
    %188 = vmatprep.subr.mxu0 0.0
    %189 = vmatpush1.msra.mxu0 %v176
    %190 = vmatprep.subr.mxu0 0.0
    %191 = vmatpush1.msra.mxu0 %v177
    %192 = vmatprep.subr.mxu0 0.0
    %193 = vmatpush1.msra.mxu0 %v178
    %194 = vmatprep.subr.mxu0 0.0
    %195 = vmatpush1.msra.mxu0 0.0
    %196 = vmatprep.subr.mxu0 0.0
    %197 = vmatpush1.msra.mxu0 0.0
    %198 = vmatprep.subr.mxu0 0.0
    %199 = vmatpush1.msra.mxu0 0.0
    %200 = vmatprep.subr.mxu0 0.0
    %201 = vmatpush1.msra.mxu0 0.0
    %202 = vmatprep.subr.mxu0 0.0
    %203 = vmatpush1.msra.mxu0 0.0
    %204 = vmatprep.subr.mxu0 0.0
    %205 = vmatpush1.msra.mxu0 0.0
    %206 = vmatprep.subr.mxu0 0.0
    %207 = vmatpush1.msra.mxu0 0.0
    %208 = vmatprep.subr.mxu0 0.0
    %209 = vmatpush1.msra.mxu0 0.0
    %210 = vmatprep.subr.mxu0 0.0
    %211 = vmatpush1.msra.mxu0 0.0
    %212 = vmatprep.subr.mxu0 0.0
    %213 = vmatpush1.msra.mxu0 0.0
    %214 = vmatprep.subr.mxu0 0.0
    %215 = vmatpush1.msra.mxu0 0.0
    %216 = vmatprep.subr.mxu0 0.0
    %217 = vmatpush1.msra.mxu0 0.0
    %218 = vmatprep.subr.mxu0 0.0
    %219 = vmatpush1.msra.mxu0 0.0
    %220 = vmatprep.subr.mxu0 0.0
    %221 = vmatpush1.msra.mxu0 0.0
    %222 = vmatprep.subr.mxu0 0.0
    %223 = vmatpush1.msra.mxu0 0.0
    %224 = vmatprep.subr.mxu0 0.0
    %225 = vmatpush1.msra.mxu0 0.0
    %226 = vmatprep.subr.mxu0 0.0
    %227 = vmatpush1.msra.mxu0 0.0
    %228 = vmatprep.subr.mxu0 0.0
    %229 = vmatpush1.msra.mxu0 0.0
    %230 = vmatprep.subr.mxu0 0.0
    %231 = vmatpush1.msra.mxu0 0.0
    %232 = vmatprep.subr.mxu0 0.0
    %233 = vmatpush1.msra.mxu0 0.0
    %234 = vmatprep.subr.mxu0 0.0
    %235 = vmatpush1.msra.mxu0 0.0
    %236 = vmatprep.subr.mxu0 0.0
    %237 = vmatpush1.msra.mxu0 0.0
    %238 = vmatprep.subr.mxu0 0.0
    %239 = vmatpush1.msra.mxu0 0.0
    %240 = vmatprep.subr.mxu0 0.0
    %241 = vmatpush1.msra.mxu0 0.0
    %242 = vmatprep.subr.mxu0 0.0
    %243 = vmatpush1.msra.mxu0 0.0
    %244 = vmatprep.subr.mxu0 0.0
    %245 = vmatpush1.msra.mxu0 0.0
    %246 = vmatprep.subr.mxu0 0.0
    %247 = vmatpush1.msra.mxu0 0.0
    %248 = vmatprep.subr.mxu0 0.0
    %249 = vmatpush1.msra.mxu0 0.0
    %250 = vmatprep.mubr.f32.mxu0 0.0
    %251 = vmatmul.mubr.f32.gmra.mrb[0].mxu0 %v181
    %v252 = vpop.f32.mrb[0].mxu0
    %v253 = vadd.f32 0.0, %v252
    %v254 = vpop.f32.mrb[0].mxu0
    %255 = vmatprep.mubr.f32.mxu0 0.0
    %256 = vmatmul.mubr.f32.gmra.mrb[0].mxu0 %v184
    %v257 = vpop.f32.mrb[0].mxu0
    %v258 = vadd.f32 0.0, %v257
    %v259 = vpop.f32.mrb[0].mxu0
    %260 = vdwg.mxu0
    %v261 = vmax.f32 %v253, 0.0
    %v262 = vmax.f32 %v258, 0.0
    %263 = vst.msk [vmem:[#allocation8] sm:$0xff] %vm179, %v261
    %264 = vst.msk [vmem:[#allocation8 + $0x8] sm:$0xff] %vm179, %v262
    %265 = vrot.lane.b32.xlu0 %v171, 96
    %v266 = vpop.permute.xlu0 %265
    %267 = vrot.lane.b32.xlu0 %v173, 96
    %v268 = vpop.permute.xlu0 %267
    %v269 = vsel %vm179, %v266, 0
    %v271 = vsel %vm179, %v268, 0
    %273 = vmatprep.subr.mxu0 0.0
    %274 = vmatpush1.msra.mxu0 %v175
    %275 = vmatprep.subr.mxu0 0.0
    %276 = vmatpush1.msra.mxu0 %v176
    %277 = vmatprep.subr.mxu0 0.0
    %278 = vmatpush1.msra.mxu0 %v177
    %279 = vmatprep.subr.mxu0 0.0
    %280 = vmatpush1.msra.mxu0 %v178
    %281 = vmatprep.subr.mxu0 0.0
    %282 = vmatpush1.msra.mxu0 0.0
    %283 = vmatprep.subr.mxu0 0.0
    %284 = vmatpush1.msra.mxu0 0.0
    %285 = vmatprep.subr.mxu0 0.0
    %286 = vmatpush1.msra.mxu0 0.0
    %287 = vmatprep.subr.mxu0 0.0
    %288 = vmatpush1.msra.mxu0 0.0
    %289 = vmatprep.subr.mxu0 0.0
    %290 = vmatpush1.msra.mxu0 0.0
    %291 = vmatprep.subr.mxu0 0.0
    %292 = vmatpush1.msra.mxu0 0.0
    %293 = vmatprep.subr.mxu0 0.0
    %294 = vmatpush1.msra.mxu0 0.0
    %295 = vmatprep.subr.mxu0 0.0
    %296 = vmatpush1.msra.mxu0 0.0
    %297 = vmatprep.subr.mxu0 0.0
    %298 = vmatpush1.msra.mxu0 0.0
    %299 = vmatprep.subr.mxu0 0.0
    %300 = vmatpush1.msra.mxu0 0.0
    %301 = vmatprep.subr.mxu0 0.0
    %302 = vmatpush1.msra.mxu0 0.0
    %303 = vmatprep.subr.mxu0 0.0
    %304 = vmatpush1.msra.mxu0 0.0
    %305 = vmatprep.subr.mxu0 0.0
    %306 = vmatpush1.msra.mxu0 0.0
    %307 = vmatprep.subr.mxu0 0.0
    %308 = vmatpush1.msra.mxu0 0.0
    %309 = vmatprep.subr.mxu0 0.0
    %310 = vmatpush1.msra.mxu0 0.0
    %311 = vmatprep.subr.mxu0 0.0
    %312 = vmatpush1.msra.mxu0 0.0
    %313 = vmatprep.subr.mxu0 0.0
    %314 = vmatpush1.msra.mxu0 0.0
    %315 = vmatprep.subr.mxu0 0.0
    %316 = vmatpush1.msra.mxu0 0.0
    %317 = vmatprep.subr.mxu0 0.0
    %318 = vmatpush1.msra.mxu0 0.0
    %319 = vmatprep.subr.mxu0 0.0
    %320 = vmatpush1.msra.mxu0 0.0
    %321 = vmatprep.subr.mxu0 0.0
    %322 = vmatpush1.msra.mxu0 0.0
    %323 = vmatprep.subr.mxu0 0.0
    %324 = vmatpush1.msra.mxu0 0.0
    %325 = vmatprep.subr.mxu0 0.0
    %326 = vmatpush1.msra.mxu0 0.0
    %327 = vmatprep.subr.mxu0 0.0
    %328 = vmatpush1.msra.mxu0 0.0
    %329 = vmatprep.subr.mxu0 0.0
    %330 = vmatpush1.msra.mxu0 0.0
    %331 = vmatprep.subr.mxu0 0.0
    %332 = vmatpush1.msra.mxu0 0.0
    %333 = vmatprep.subr.mxu0 0.0
    %334 = vmatpush1.msra.mxu0 0.0
    %335 = vmatprep.subr.mxu0 0.0
    %336 = vmatpush1.msra.mxu0 0.0
    %337 = vmatprep.mubr.f32.mxu0 0.0
    %338 = vmatmul.mubr.f32.gmra.mrb[0].mxu0 %v269
    %v339 = vpop.f32.mrb[0].mxu0
    %v340 = vadd.f32 0.0, %v339
    %v341 = vpop.f32.mrb[0].mxu0
    %342 = vmatprep.mubr.f32.mxu0 0.0
    %343 = vmatmul.mubr.f32.gmra.mrb[0].mxu0 %v271
    %v344 = vpop.f32.mrb[0].mxu0
    %v345 = vadd.f32 0.0, %v344
    %v346 = vpop.f32.mrb[0].mxu0
    %347 = vdwg.mxu0
    %v348 = vmax.f32 %v340, 0.0
    %v349 = vmax.f32 %v345, 0.0
    %s350 = scalar_lea.vmem [#allocation8], 16
    %351 = vst.msk [vmem:[%s350] sm:$0xff] %vm179, %v348
    %352 = vst.msk [vmem:[%s350 + $0x8] sm:$0xff] %vm179, %v349
    %353 = vrot.lane.b32.xlu0 %v171, 64
    %v354 = vpop.permute.xlu0 %353
    %355 = vrot.lane.b32.xlu0 %v173, 64
    %v356 = vpop.permute.xlu0 %355
    %v357 = vsel %vm179, %v354, 0
    %v359 = vsel %vm179, %v356, 0
    %361 = vmatprep.subr.mxu0 0.0
    %362 = vmatpush1.msra.mxu0 %v175
    %363 = vmatprep.subr.mxu0 0.0
    %364 = vmatpush1.msra.mxu0 %v176
    %365 = vmatprep.subr.mxu0 0.0
    %366 = vmatpush1.msra.mxu0 %v177
    %367 = vmatprep.subr.mxu0 0.0
    %368 = vmatpush1.msra.mxu0 %v178
    %369 = vmatprep.subr.mxu0 0.0
    %370 = vmatpush1.msra.mxu0 0.0
    %371 = vmatprep.subr.mxu0 0.0
    %372 = vmatpush1.msra.mxu0 0.0
    %373 = vmatprep.subr.mxu0 0.0
    %374 = vmatpush1.msra.mxu0 0.0
    %375 = vmatprep.subr.mxu0 0.0
    %376 = vmatpush1.msra.mxu0 0.0
    %377 = vmatprep.subr.mxu0 0.0
    %378 = vmatpush1.msra.mxu0 0.0
    %379 = vmatprep.subr.mxu0 0.0
    %380 = vmatpush1.msra.mxu0 0.0
    %381 = vmatprep.subr.mxu0 0.0
    %382 = vmatpush1.msra.mxu0 0.0
    %383 = vmatprep.subr.mxu0 0.0
    %384 = vmatpush1.msra.mxu0 0.0
    %385 = vmatprep.subr.mxu0 0.0
    %386 = vmatpush1.msra.mxu0 0.0
    %387 = vmatprep.subr.mxu0 0.0
    %388 = vmatpush1.msra.mxu0 0.0
    %389 = vmatprep.subr.mxu0 0.0
    %390 = vmatpush1.msra.mxu0 0.0
    %391 = vmatprep.subr.mxu0 0.0
    %392 = vmatpush1.msra.mxu0 0.0
    %393 = vmatprep.subr.mxu0 0.0
    %394 = vmatpush1.msra.mxu0 0.0
    %395 = vmatprep.subr.mxu0 0.0
    %396 = vmatpush1.msra.mxu0 0.0
    %397 = vmatprep.subr.mxu0 0.0
    %398 = vmatpush1.msra.mxu0 0.0
    %399 = vmatprep.subr.mxu0 0.0
    %400 = vmatpush1.msra.mxu0 0.0
    %401 = vmatprep.subr.mxu0 0.0
    %402 = vmatpush1.msra.mxu0 0.0
    %403 = vmatprep.subr.mxu0 0.0
    %404 = vmatpush1.msra.mxu0 0.0
    %405 = vmatprep.subr.mxu0 0.0
    %406 = vmatpush1.msra.mxu0 0.0
    %407 = vmatprep.subr.mxu0 0.0
    %408 = vmatpush1.msra.mxu0 0.0
    %409 = vmatprep.subr.mxu0 0.0
    %410 = vmatpush1.msra.mxu0 0.0
    %411 = vmatprep.subr.mxu0 0.0
    %412 = vmatpush1.msra.mxu0 0.0
    %413 = vmatprep.subr.mxu0 0.0
    %414 = vmatpush1.msra.mxu0 0.0
    %415 = vmatprep.subr.mxu0 0.0
    %416 = vmatpush1.msra.mxu0 0.0
    %417 = vmatprep.subr.mxu0 0.0
    %418 = vmatpush1.msra.mxu0 0.0
    %419 = vmatprep.subr.mxu0 0.0
    %420 = vmatpush1.msra.mxu0 0.0
    %421 = vmatprep.subr.mxu0 0.0
    %422 = vmatpush1.msra.mxu0 0.0
    %423 = vmatprep.subr.mxu0 0.0
    %424 = vmatpush1.msra.mxu0 0.0
    %425 = vmatprep.mubr.f32.mxu0 0.0
    %426 = vmatmul.mubr.f32.gmra.mrb[0].mxu0 %v357
    %v427 = vpop.f32.mrb[0].mxu0
    %v428 = vadd.f32 0.0, %v427
    %v429 = vpop.f32.mrb[0].mxu0
    %430 = vmatprep.mubr.f32.mxu0 0.0
    %431 = vmatmul.mubr.f32.gmra.mrb[0].mxu0 %v359
    %v432 = vpop.f32.mrb[0].mxu0
    %v433 = vadd.f32 0.0, %v432
    %v434 = vpop.f32.mrb[0].mxu0
    %435 = vdwg.mxu0
    %v436 = vmax.f32 %v428, 0.0
    %v437 = vmax.f32 %v433, 0.0
    %s438 = scalar_lea.vmem [#allocation8], 32
    %439 = vst.msk [vmem:[%s438] sm:$0xff] %vm179, %v436
    %440 = vst.msk [vmem:[%s438 + $0x8] sm:$0xff] %vm179, %v437
    %441 = vrot.lane.b32.xlu0 %v171, 32
    %v442 = vpop.permute.xlu0 %441
    %443 = vrot.lane.b32.xlu0 %v173, 32
    %v444 = vpop.permute.xlu0 %443
    %v445 = vsel %vm179, %v442, 0
    %v447 = vsel %vm179, %v444, 0
    %449 = vmatprep.subr.mxu0 0.0
    %450 = vmatpush1.msra.mxu0 %v175
    %451 = vmatprep.subr.mxu0 0.0
    %452 = vmatpush1.msra.mxu0 %v176
    %453 = vmatprep.subr.mxu0 0.0
    %454 = vmatpush1.msra.mxu0 %v177
    %455 = vmatprep.subr.mxu0 0.0
    %456 = vmatpush1.msra.mxu0 %v178
    %457 = vmatprep.subr.mxu0 0.0
    %458 = vmatpush1.msra.mxu0 0.0
    %459 = vmatprep.subr.mxu0 0.0
    %460 = vmatpush1.msra.mxu0 0.0
    %461 = vmatprep.subr.mxu0 0.0
    %462 = vmatpush1.msra.mxu0 0.0
    %463 = vmatprep.subr.mxu0 0.0
    %464 = vmatpush1.msra.mxu0 0.0
    %465 = vmatprep.subr.mxu0 0.0
    %466 = vmatpush1.msra.mxu0 0.0
    %467 = vmatprep.subr.mxu0 0.0
    %468 = vmatpush1.msra.mxu0 0.0
    %469 = vmatprep.subr.mxu0 0.0
    %470 = vmatpush1.msra.mxu0 0.0
    %471 = vmatprep.subr.mxu0 0.0
    %472 = vmatpush1.msra.mxu0 0.0
    %473 = vmatprep.subr.mxu0 0.0
    %474 = vmatpush1.msra.mxu0 0.0
    %475 = vmatprep.subr.mxu0 0.0
    %476 = vmatpush1.msra.mxu0 0.0
    %477 = vmatprep.subr.mxu0 0.0
    %478 = vmatpush1.msra.mxu0 0.0
    %479 = vmatprep.subr.mxu0 0.0
    %480 = vmatpush1.msra.mxu0 0.0
    %481 = vmatprep.subr.mxu0 0.0
    %482 = vmatpush1.msra.mxu0 0.0
    %483 = vmatprep.subr.mxu0 0.0
    %484 = vmatpush1.msra.mxu0 0.0
    %485 = vmatprep.subr.mxu0 0.0
    %486 = vmatpush1.msra.mxu0 0.0
    %487 = vmatprep.subr.mxu0 0.0
    %488 = vmatpush1.msra.mxu0 0.0
    %489 = vmatprep.subr.mxu0 0.0
    %490 = vmatpush1.msra.mxu0 0.0
    %491 = vmatprep.subr.mxu0 0.0
    %492 = vmatpush1.msra.mxu0 0.0
    %493 = vmatprep.subr.mxu0 0.0
    %494 = vmatpush1.msra.mxu0 0.0
    %495 = vmatprep.subr.mxu0 0.0
    %496 = vmatpush1.msra.mxu0 0.0
    %497 = vmatprep.subr.mxu0 0.0
    %498 = vmatpush1.msra.mxu0 0.0
    %499 = vmatprep.subr.mxu0 0.0
    %500 = vmatpush1.msra.mxu0 0.0
    %501 = vmatprep.subr.mxu0 0.0
    %502 = vmatpush1.msra.mxu0 0.0
    %503 = vmatprep.subr.mxu0 0.0
    %504 = vmatpush1.msra.mxu0 0.0
    %505 = vmatprep.subr.mxu0 0.0
    %506 = vmatpush1.msra.mxu0 0.0
    %507 = vmatprep.subr.mxu0 0.0
    %508 = vmatpush1.msra.mxu0 0.0
    %509 = vmatprep.subr.mxu0 0.0
    %510 = vmatpush1.msra.mxu0 0.0
    %511 = vmatprep.subr.mxu0 0.0
    %512 = vmatpush1.msra.mxu0 0.0
    %513 = vmatprep.mubr.f32.mxu0 0.0
    %514 = vmatmul.mubr.f32.gmra.mrb[0].mxu0 %v445
    %v515 = vpop.f32.mrb[0].mxu0
    %v516 = vadd.f32 0.0, %v515
    %v517 = vpop.f32.mrb[0].mxu0
    %518 = vmatprep.mubr.f32.mxu0 0.0
    %519 = vmatmul.mubr.f32.gmra.mrb[0].mxu0 %v447
    %v520 = vpop.f32.mrb[0].mxu0
    %v521 = vadd.f32 0.0, %v520
    %v522 = vpop.f32.mrb[0].mxu0
    %523 = vdwg.mxu0
    %v524 = vmax.f32 %v516, 0.0
    %v525 = vmax.f32 %v521, 0.0
    %s526 = scalar_lea.vmem [#allocation8], 48
    %527 = vst.msk [vmem:[%s526] sm:$0xff] %vm179, %v524
    %528 = vst.msk [vmem:[%s526 + $0x8] sm:$0xff] %vm179, %v525
    %v530 = vsel %vm179, %v172, 0
    %v533 = vsel %vm179, %v174, 0
    %535 = vmatprep.subr.mxu0 0.0
    %536 = vmatpush1.msra.mxu0 %v175
    %537 = vmatprep.subr.mxu0 0.0
    %538 = vmatpush1.msra.mxu0 %v176
    %539 = vmatprep.subr.mxu0 0.0
    %540 = vmatpush1.msra.mxu0 %v177
    %541 = vmatprep.subr.mxu0 0.0
    %542 = vmatpush1.msra.mxu0 %v178
    %543 = vmatprep.subr.mxu0 0.0
    %544 = vmatpush1.msra.mxu0 0.0
    %545 = vmatprep.subr.mxu0 0.0
    %546 = vmatpush1.msra.mxu0 0.0
    %547 = vmatprep.subr.mxu0 0.0
    %548 = vmatpush1.msra.mxu0 0.0
    %549 = vmatprep.subr.mxu0 0.0
    %550 = vmatpush1.msra.mxu0 0.0
    %551 = vmatprep.subr.mxu0 0.0
    %552 = vmatpush1.msra.mxu0 0.0
    %553 = vmatprep.subr.mxu0 0.0
    %554 = vmatpush1.msra.mxu0 0.0
    %555 = vmatprep.subr.mxu0 0.0
    %556 = vmatpush1.msra.mxu0 0.0
    %557 = vmatprep.subr.mxu0 0.0
    %558 = vmatpush1.msra.mxu0 0.0
    %559 = vmatprep.subr.mxu0 0.0
    %560 = vmatpush1.msra.mxu0 0.0
    %561 = vmatprep.subr.mxu0 0.0
    %562 = vmatpush1.msra.mxu0 0.0
    %563 = vmatprep.subr.mxu0 0.0
    %564 = vmatpush1.msra.mxu0 0.0
    %565 = vmatprep.subr.mxu0 0.0
    %566 = vmatpush1.msra.mxu0 0.0
    %567 = vmatprep.subr.mxu0 0.0
    %568 = vmatpush1.msra.mxu0 0.0
    %569 = vmatprep.subr.mxu0 0.0
    %570 = vmatpush1.msra.mxu0 0.0
    %571 = vmatprep.subr.mxu0 0.0
    %572 = vmatpush1.msra.mxu0 0.0
    %573 = vmatprep.subr.mxu0 0.0
    %574 = vmatpush1.msra.mxu0 0.0
    %575 = vmatprep.subr.mxu0 0.0
    %576 = vmatpush1.msra.mxu0 0.0
    %577 = vmatprep.subr.mxu0 0.0
    %578 = vmatpush1.msra.mxu0 0.0
    %579 = vmatprep.subr.mxu0 0.0
    %580 = vmatpush1.msra.mxu0 0.0
    %581 = vmatprep.subr.mxu0 0.0
    %582 = vmatpush1.msra.mxu0 0.0
    %583 = vmatprep.subr.mxu0 0.0
    %584 = vmatpush1.msra.mxu0 0.0
    %585 = vmatprep.subr.mxu0 0.0
    %586 = vmatpush1.msra.mxu0 0.0
    %587 = vmatprep.subr.mxu0 0.0
    %588 = vmatpush1.msra.mxu0 0.0
    %589 = vmatprep.subr.mxu0 0.0
    %590 = vmatpush1.msra.mxu0 0.0
    %591 = vmatprep.subr.mxu0 0.0
    %592 = vmatpush1.msra.mxu0 0.0
    %593 = vmatprep.subr.mxu0 0.0
    %594 = vmatpush1.msra.mxu0 0.0
    %595 = vmatprep.subr.mxu0 0.0
    %596 = vmatpush1.msra.mxu0 0.0
    %597 = vmatprep.subr.mxu0 0.0
    %598 = vmatpush1.msra.mxu0 0.0
    %599 = vmatprep.mubr.f32.mxu0 0.0
    %600 = vmatmul.mubr.f32.gmra.mrb[0].mxu0 %v530
    %v601 = vpop.f32.mrb[0].mxu0
    %v602 = vadd.f32 0.0, %v601
    %v603 = vpop.f32.mrb[0].mxu0
    %604 = vmatprep.mubr.f32.mxu0 0.0
    %605 = vmatmul.mubr.f32.gmra.mrb[0].mxu0 %v533
    %v606 = vpop.f32.mrb[0].mxu0
    %v607 = vadd.f32 0.0, %v606
    %v608 = vpop.f32.mrb[0].mxu0
    %609 = vdwg.mxu0
    %v610 = vmax.f32 %v602, 0.0
    %v611 = vmax.f32 %v607, 0.0
    %s612 = scalar_lea.vmem [#allocation8], 64
    %613 = vst.msk [vmem:[%s612] sm:$0xff] %vm179, %v610
    %614 = vst.msk [vmem:[%s612 + $0x8] sm:$0xff] %vm179, %v611
    %615 = vrot.lane.b32.xlu0 %v172, 96
    %v616 = vpop.permute.xlu0 %615
    %617 = vrot.lane.b32.xlu0 %v174, 96
    %v618 = vpop.permute.xlu0 %617
    %v619 = vsel %vm179, %v616, 0
    %v621 = vsel %vm179, %v618, 0
    %623 = vmatprep.subr.mxu0 0.0
    %624 = vmatpush1.msra.mxu0 %v175
    %625 = vmatprep.subr.mxu0 0.0
    %626 = vmatpush1.msra.mxu0 %v176
    %627 = vmatprep.subr.mxu0 0.0
    %628 = vmatpush1.msra.mxu0 %v177
    %629 = vmatprep.subr.mxu0 0.0
    %630 = vmatpush1.msra.mxu0 %v178
    %631 = vmatprep.subr.mxu0 0.0
    %632 = vmatpush1.msra.mxu0 0.0
    %633 = vmatprep.subr.mxu0 0.0
    %634 = vmatpush1.msra.mxu0 0.0
    %635 = vmatprep.subr.mxu0 0.0
    %636 = vmatpush1.msra.mxu0 0.0
    %637 = vmatprep.subr.mxu0 0.0
    %638 = vmatpush1.msra.mxu0 0.0
    %639 = vmatprep.subr.mxu0 0.0
    %640 = vmatpush1.msra.mxu0 0.0
    %641 = vmatprep.subr.mxu0 0.0
    %642 = vmatpush1.msra.mxu0 0.0
    %643 = vmatprep.subr.mxu0 0.0
    %644 = vmatpush1.msra.mxu0 0.0
    %645 = vmatprep.subr.mxu0 0.0
    %646 = vmatpush1.msra.mxu0 0.0
    %647 = vmatprep.subr.mxu0 0.0
    %648 = vmatpush1.msra.mxu0 0.0
    %649 = vmatprep.subr.mxu0 0.0
    %650 = vmatpush1.msra.mxu0 0.0
    %651 = vmatprep.subr.mxu0 0.0
    %652 = vmatpush1.msra.mxu0 0.0
    %653 = vmatprep.subr.mxu0 0.0
    %654 = vmatpush1.msra.mxu0 0.0
    %655 = vmatprep.subr.mxu0 0.0
    %656 = vmatpush1.msra.mxu0 0.0
    %657 = vmatprep.subr.mxu0 0.0
    %658 = vmatpush1.msra.mxu0 0.0
    %659 = vmatprep.subr.mxu0 0.0
    %660 = vmatpush1.msra.mxu0 0.0
    %661 = vmatprep.subr.mxu0 0.0
    %662 = vmatpush1.msra.mxu0 0.0
    %663 = vmatprep.subr.mxu0 0.0
    %664 = vmatpush1.msra.mxu0 0.0
    %665 = vmatprep.subr.mxu0 0.0
    %666 = vmatpush1.msra.mxu0 0.0
    %667 = vmatprep.subr.mxu0 0.0
    %668 = vmatpush1.msra.mxu0 0.0
    %669 = vmatprep.subr.mxu0 0.0
    %670 = vmatpush1.msra.mxu0 0.0
    %671 = vmatprep.subr.mxu0 0.0
    %672 = vmatpush1.msra.mxu0 0.0
    %673 = vmatprep.subr.mxu0 0.0
    %674 = vmatpush1.msra.mxu0 0.0
    %675 = vmatprep.subr.mxu0 0.0
    %676 = vmatpush1.msra.mxu0 0.0
    %677 = vmatprep.subr.mxu0 0.0
    %678 = vmatpush1.msra.mxu0 0.0
    %679 = vmatprep.subr.mxu0 0.0
    %680 = vmatpush1.msra.mxu0 0.0
    %681 = vmatprep.subr.mxu0 0.0
    %682 = vmatpush1.msra.mxu0 0.0
    %683 = vmatprep.subr.mxu0 0.0
    %684 = vmatpush1.msra.mxu0 0.0
    %685 = vmatprep.subr.mxu0 0.0
    %686 = vmatpush1.msra.mxu0 0.0
    %687 = vmatprep.mubr.f32.mxu0 0.0
    %688 = vmatmul.mubr.f32.gmra.mrb[0].mxu0 %v619
    %v689 = vpop.f32.mrb[0].mxu0
    %v690 = vadd.f32 0.0, %v689
    %v691 = vpop.f32.mrb[0].mxu0
    %692 = vmatprep.mubr.f32.mxu0 0.0
    %693 = vmatmul.mubr.f32.gmra.mrb[0].mxu0 %v621
    %v694 = vpop.f32.mrb[0].mxu0
    %v695 = vadd.f32 0.0, %v694
    %v696 = vpop.f32.mrb[0].mxu0
    %697 = vdwg.mxu0
    %v698 = vmax.f32 %v690, 0.0
    %v699 = vmax.f32 %v695, 0.0
    %s700 = scalar_lea.vmem [#allocation8], 80
    %701 = vst.msk [vmem:[%s700] sm:$0xff] %vm179, %v698
    %702 = vst.msk [vmem:[%s700 + $0x8] sm:$0xff] %vm179, %v699
    %703 = vrot.lane.b32.xlu0 %v172, 64
    %v704 = vpop.permute.xlu0 %703
    %705 = vrot.lane.b32.xlu0 %v174, 64
    %v706 = vpop.permute.xlu0 %705
    %v707 = vsel %vm179, %v704, 0
    %v709 = vsel %vm179, %v706, 0
    %711 = vmatprep.subr.mxu0 0.0
    %712 = vmatpush1.msra.mxu0 %v175
    %713 = vmatprep.subr.mxu0 0.0
    %714 = vmatpush1.msra.mxu0 %v176
    %715 = vmatprep.subr.mxu0 0.0
    %716 = vmatpush1.msra.mxu0 %v177
    %717 = vmatprep.subr.mxu0 0.0
    %718 = vmatpush1.msra.mxu0 %v178
    %719 = vmatprep.subr.mxu0 0.0
    %720 = vmatpush1.msra.mxu0 0.0
    %721 = vmatprep.subr.mxu0 0.0
    %722 = vmatpush1.msra.mxu0 0.0
    %723 = vmatprep.subr.mxu0 0.0
    %724 = vmatpush1.msra.mxu0 0.0
    %725 = vmatprep.subr.mxu0 0.0
    %726 = vmatpush1.msra.mxu0 0.0
    %727 = vmatprep.subr.mxu0 0.0
    %728 = vmatpush1.msra.mxu0 0.0
    %729 = vmatprep.subr.mxu0 0.0
    %730 = vmatpush1.msra.mxu0 0.0
    %731 = vmatprep.subr.mxu0 0.0
    %732 = vmatpush1.msra.mxu0 0.0
    %733 = vmatprep.subr.mxu0 0.0
    %734 = vmatpush1.msra.mxu0 0.0
    %735 = vmatprep.subr.mxu0 0.0
    %736 = vmatpush1.msra.mxu0 0.0
    %737 = vmatprep.subr.mxu0 0.0
    %738 = vmatpush1.msra.mxu0 0.0
    %739 = vmatprep.subr.mxu0 0.0
    %740 = vmatpush1.msra.mxu0 0.0
    %741 = vmatprep.subr.mxu0 0.0
    %742 = vmatpush1.msra.mxu0 0.0
    %743 = vmatprep.subr.mxu0 0.0
    %744 = vmatpush1.msra.mxu0 0.0
    %745 = vmatprep.subr.mxu0 0.0
    %746 = vmatpush1.msra.mxu0 0.0
    %747 = vmatprep.subr.mxu0 0.0
    %748 = vmatpush1.msra.mxu0 0.0
    %749 = vmatprep.subr.mxu0 0.0
    %750 = vmatpush1.msra.mxu0 0.0
    %751 = vmatprep.subr.mxu0 0.0
    %752 = vmatpush1.msra.mxu0 0.0
    %753 = vmatprep.subr.mxu0 0.0
    %754 = vmatpush1.msra.mxu0 0.0
    %755 = vmatprep.subr.mxu0 0.0
    %756 = vmatpush1.msra.mxu0 0.0
    %757 = vmatprep.subr.mxu0 0.0
    %758 = vmatpush1.msra.mxu0 0.0
    %759 = vmatprep.subr.mxu0 0.0
    %760 = vmatpush1.msra.mxu0 0.0
    %761 = vmatprep.subr.mxu0 0.0
    %762 = vmatpush1.msra.mxu0 0.0
    %763 = vmatprep.subr.mxu0 0.0
    %764 = vmatpush1.msra.mxu0 0.0
    %765 = vmatprep.subr.mxu0 0.0
    %766 = vmatpush1.msra.mxu0 0.0
    %767 = vmatprep.subr.mxu0 0.0
    %768 = vmatpush1.msra.mxu0 0.0
    %769 = vmatprep.subr.mxu0 0.0
    %770 = vmatpush1.msra.mxu0 0.0
    %771 = vmatprep.subr.mxu0 0.0
    %772 = vmatpush1.msra.mxu0 0.0
    %773 = vmatprep.subr.mxu0 0.0
    %774 = vmatpush1.msra.mxu0 0.0
    %775 = vmatprep.mubr.f32.mxu0 0.0
    %776 = vmatmul.mubr.f32.gmra.mrb[0].mxu0 %v707
    %v777 = vpop.f32.mrb[0].mxu0
    %v778 = vadd.f32 0.0, %v777
    %v779 = vpop.f32.mrb[0].mxu0
    %780 = vmatprep.mubr.f32.mxu0 0.0
    %781 = vmatmul.mubr.f32.gmra.mrb[0].mxu0 %v709
    %v782 = vpop.f32.mrb[0].mxu0
    %v783 = vadd.f32 0.0, %v782
    %v784 = vpop.f32.mrb[0].mxu0
    %785 = vdwg.mxu0
    %v786 = vmax.f32 %v778, 0.0
    %v787 = vmax.f32 %v783, 0.0
    %s788 = scalar_lea.vmem [#allocation8], 96
    %789 = vst.msk [vmem:[%s788] sm:$0xff] %vm179, %v786
    %790 = vst.msk [vmem:[%s788 + $0x8] sm:$0xff] %vm179, %v787
    %791 = vrot.lane.b32.xlu0 %v172, 32
    %v792 = vpop.permute.xlu0 %791
    %793 = vrot.lane.b32.xlu0 %v174, 32
    %v794 = vpop.permute.xlu0 %793
    %v795 = vsel %vm179, %v792, 0
    %v797 = vsel %vm179, %v794, 0
    %799 = vmatprep.subr.mxu0 0.0
    %800 = vmatpush1.msra.mxu0 %v175
    %801 = vmatprep.subr.mxu0 0.0
    %802 = vmatpush1.msra.mxu0 %v176
    %803 = vmatprep.subr.mxu0 0.0
    %804 = vmatpush1.msra.mxu0 %v177
    %805 = vmatprep.subr.mxu0 0.0
    %806 = vmatpush1.msra.mxu0 %v178
    %807 = vmatprep.subr.mxu0 0.0
    %808 = vmatpush1.msra.mxu0 0.0
    %809 = vmatprep.subr.mxu0 0.0
    %810 = vmatpush1.msra.mxu0 0.0
    %811 = vmatprep.subr.mxu0 0.0
    %812 = vmatpush1.msra.mxu0 0.0
    %813 = vmatprep.subr.mxu0 0.0
    %814 = vmatpush1.msra.mxu0 0.0
    %815 = vmatprep.subr.mxu0 0.0
    %816 = vmatpush1.msra.mxu0 0.0
    %817 = vmatprep.subr.mxu0 0.0
    %818 = vmatpush1.msra.mxu0 0.0
    %819 = vmatprep.subr.mxu0 0.0
    %820 = vmatpush1.msra.mxu0 0.0
    %821 = vmatprep.subr.mxu0 0.0
    %822 = vmatpush1.msra.mxu0 0.0
    %823 = vmatprep.subr.mxu0 0.0
    %824 = vmatpush1.msra.mxu0 0.0
    %825 = vmatprep.subr.mxu0 0.0
    %826 = vmatpush1.msra.mxu0 0.0
    %827 = vmatprep.subr.mxu0 0.0
    %828 = vmatpush1.msra.mxu0 0.0
    %829 = vmatprep.subr.mxu0 0.0
    %830 = vmatpush1.msra.mxu0 0.0
    %831 = vmatprep.subr.mxu0 0.0
    %832 = vmatpush1.msra.mxu0 0.0
    %833 = vmatprep.subr.mxu0 0.0
    %834 = vmatpush1.msra.mxu0 0.0
    %835 = vmatprep.subr.mxu0 0.0
    %836 = vmatpush1.msra.mxu0 0.0
    %837 = vmatprep.subr.mxu0 0.0
    %838 = vmatpush1.msra.mxu0 0.0
    %839 = vmatprep.subr.mxu0 0.0
    %840 = vmatpush1.msra.mxu0 0.0
    %841 = vmatprep.subr.mxu0 0.0
    %842 = vmatpush1.msra.mxu0 0.0
    %843 = vmatprep.subr.mxu0 0.0
    %844 = vmatpush1.msra.mxu0 0.0
    %845 = vmatprep.subr.mxu0 0.0
    %846 = vmatpush1.msra.mxu0 0.0
    %847 = vmatprep.subr.mxu0 0.0
    %848 = vmatpush1.msra.mxu0 0.0
    %849 = vmatprep.subr.mxu0 0.0
    %850 = vmatpush1.msra.mxu0 0.0
    %851 = vmatprep.subr.mxu0 0.0
    %852 = vmatpush1.msra.mxu0 0.0
    %853 = vmatprep.subr.mxu0 0.0
    %854 = vmatpush1.msra.mxu0 0.0
    %855 = vmatprep.subr.mxu0 0.0
    %856 = vmatpush1.msra.mxu0 0.0
    %857 = vmatprep.subr.mxu0 0.0
    %858 = vmatpush1.msra.mxu0 0.0
    %859 = vmatprep.subr.mxu0 0.0
    %860 = vmatpush1.msra.mxu0 0.0
    %861 = vmatprep.subr.mxu0 0.0
    %862 = vmatpush1.msra.mxu0 0.0
    %863 = vmatprep.mubr.f32.mxu0 0.0
    %864 = vmatmul.mubr.f32.gmra.mrb[0].mxu0 %v795
    %v865 = vpop.f32.mrb[0].mxu0
    %v866 = vadd.f32 0.0, %v865
    %v867 = vpop.f32.mrb[0].mxu0
    %868 = vmatprep.mubr.f32.mxu0 0.0
    %869 = vmatmul.mubr.f32.gmra.mrb[0].mxu0 %v797
    %v870 = vpop.f32.mrb[0].mxu0
    %v871 = vadd.f32 0.0, %v870
    %v872 = vpop.f32.mrb[0].mxu0
    %873 = vdwg.mxu0
    %v874 = vmax.f32 %v866, 0.0
    %v875 = vmax.f32 %v871, 0.0
    %s876 = scalar_lea.vmem [#allocation8], 112
    %877 = vst.msk [vmem:[%s876] sm:$0xff] %vm179, %v874
    %878 = vst.msk [vmem:[%s876 + $0x8] sm:$0xff] %vm179, %v875
    // Predicated region
    $region26: #{tpu_custom_call.1} parent=1 // pred_check
      _
    $region27: #{tpu_custom_call.1} parent=1 // pred_check_branch
      %880 = sbr.rel (0) target = $region29
    $region28: #{tpu_custom_call.1} parent=1 // pred_region
      %s882 = ssub.s32 2048, 2048
      %883 = vsyncadd [#allocation4], %s882
      %s884 = sshll.u32 [#allocation8], 4
      %s885 = int_to_ptr.vmem [resolvable:$true] %s884
      %890 = dma.vmem_to_hbm [thread:$0]  %s885, 2048, %s3, [#allocation4], 128, 128, 8
    $region29: #{tpu_custom_call.1} parent=1 // pred_fallthru
      _
    // Predicated region
    $region30: #{tpu_custom_call.1} parent=1 // pred_check
      _
    $region31: #{tpu_custom_call.1} parent=1 // pred_check_branch
      %892 = sbr.rel (0) target = $region33
    $region32: #{tpu_custom_call.1} parent=1 // pred_region
      %893 = dma.done [#allocation4], 2048
    $region33: #{tpu_custom_call.1} parent=1 // pred_fallthru
      _
    %894 = vsyncpa [#allocation3], 1
    %895 = vsyncpa [#allocation6], 1
    %896 = vsyncpa [#allocation4], 1

</llo_original>
